<compile_context>
chip_gen: v6e
topology: v6e:2x2x1
jax: 0.10.0
libtpu: 0.0.40
codegen_flags: <defaults>
</compile_context>

<pallas_src>
import jax
import jax.numpy as jnp
from jax.experimental import pallas as pl
from jax.experimental.pallas import tpu as pltpu

EPS = 1e-12  # matches F.normalize default eps


def _l2_normalize(x):
    # x / max(||x||, eps)  ==  x * rsqrt(max(||x||^2, eps^2))   (EUP rsqrt)
    ss = jnp.sum(x * x, axis=1, keepdims=True)
    return x * jax.lax.rsqrt(jnp.maximum(ss, EPS * EPS))


# ----------------------------------------------------------------------------
# Fused kernel: normalize(video), normalize->Linear->normalize(audio),
# pairwise L1 matrix, weighted contraction -> scalar loss.
# ----------------------------------------------------------------------------
def _av_sync_kernel(video_ref,   # VMEM (B, D)
                    audio_ref,   # VMEM (B, Din)
                    w_ref,       # VMEM (Din, D)  Linear weight (transposed)
                    b_ref,       # VMEM (1, D)    Linear bias
                    wmat_ref,    # VMEM (B, B)    combined pos/neg weights
                    loss_ref):   # SMEM (1, 1)    scalar output
    # ---- video branch -------------------------------------------------------
    v_norm = _l2_normalize(video_ref[...])

    # ---- audio branch: normalize -> Linear -> normalize ---------------------
    a_norm = _l2_normalize(audio_ref[...])
    y = jnp.dot(a_norm, w_ref[...], preferred_element_type=jnp.float32) + b_ref[...]
    a_cl = _l2_normalize(y)

    # ---- pairwise L1 distance matrix ----------------------------------------
    # Dmat[b, j] = sum_d |v_norm[b, d] - a_cl[j, d]|        (dense VPU work)
    diff = jnp.abs(v_norm[:, None, :] - a_cl[None, :, :])   # (B, B, D)
    dmat = jnp.sum(diff, axis=-1)                           # (B, B)

    # ---- weighted contraction -> loss ----------------------------------------
    # W = I/B - C/(B*n_neg): diagonal carries dist_pos, counts C carry dist_neg.
    loss_ref[0, 0] = jnp.sum(dmat * wmat_ref[...])


# ----------------------------------------------------------------------------
# Negative-index sampling (torch.multinomial(ones(B, B-1), n_neg) equivalent):
# per-row uniform sampling without replacement from {0..B-2}, shifted past the
# diagonal. Vectorized with vmap (no per-row Python loop).
# ----------------------------------------------------------------------------
def _sample_negative_indices(key, batch, n_neg):
    row_keys = jax.random.split(key, batch)
    idx = jax.vmap(lambda k: jax.random.permutation(k, batch - 1)[:n_neg])(row_keys)
    tszs = jnp.arange(batch)[:, None]
    return jnp.where(idx >= tszs, idx + 1, idx).astype(jnp.int32)


# ----------------------------------------------------------------------------
# av_sync forward
# ----------------------------------------------------------------------------
@jax.jit
def av_sync_forward(video, audio, w_t, bias, neg_idxs):
    video = video.astype(jnp.float32)
    audio = audio.astype(jnp.float32)
    B, _ = video.shape
    n_neg = neg_idxs.shape[1]

    # Combined (B, B) weight matrix built in plain JAX: the kernel never sees
    # the index table, so there is no in-kernel gather and no SMEM table.
    counts = jnp.sum(jax.nn.one_hot(neg_idxs, B, dtype=jnp.float32), axis=1)  # (B, B)
    wmat = jnp.eye(B, dtype=jnp.float32) / B - counts / (B * n_neg)

    out = pl.pallas_call(
        _av_sync_kernel,
        out_shape=jax.ShapeDtypeStruct((1, 1), jnp.float32),
        in_specs=[
            pl.BlockSpec(memory_space=pltpu.MemorySpace.VMEM),   # video
            pl.BlockSpec(memory_space=pltpu.MemorySpace.VMEM),   # audio
            pl.BlockSpec(memory_space=pltpu.MemorySpace.VMEM),   # w_t
            pl.BlockSpec(memory_space=pltpu.MemorySpace.VMEM),   # bias
            pl.BlockSpec(memory_space=pltpu.MemorySpace.VMEM),   # weight matrix
        ],
        out_specs=pl.BlockSpec(memory_space=pltpu.MemorySpace.SMEM),
    )(video, audio, w_t, bias, wmat)
    return out[0, 0]


# ----------------------------------------------------------------------------
# Pure-JAX reference (mirrors the PyTorch forward) for a sanity check.
# ----------------------------------------------------------------------------
def _reference_forward(video, audio, w_t, bias, neg_idxs):
    B, D = video.shape
    n_neg = neg_idxs.shape[1]
    vn = video / jnp.maximum(jnp.linalg.norm(video, axis=1, keepdims=True), EPS)
    an = audio / jnp.maximum(jnp.linalg.norm(audio, axis=1, keepdims=True), EPS)
    y = an @ w_t + bias
    acl = y / jnp.maximum(jnp.linalg.norm(y, axis=1, keepdims=True), EPS)
    negs = acl[neg_idxs.reshape(-1)].reshape(B, n_neg, D).transpose(1, 0, 2)
    dist_pos = jnp.sum(jnp.abs(acl - vn)) / B
    dist_neg = jnp.sum(jnp.abs(vn[None, :, :] - negs)) / B / n_neg
    return dist_pos - dist_neg


if __name__ == "__main__":
    # Small shapes consistent with the module: batch=8, in_channel=32,
    # out_channel=32 (video feature dim must equal out_channel).
    B, IN_CH, OUT_CH = 8, 32, 32

    key = jax.random.PRNGKey(0)
    k_v, k_a, k_w, k_b, k_samp = jax.random.split(key, 5)

    video = jax.random.normal(k_v, (B, OUT_CH), dtype=jnp.float32)
    audio = jax.random.normal(k_a, (B, IN_CH), dtype=jnp.float32)

    # nn.Linear(in_channel, out_channel): W ~ U(-1/sqrt(in), 1/sqrt(in)), bias same.
    bound = 1.0 / (IN_CH ** 0.5)
    w = jax.random.uniform(k_w, (OUT_CH, IN_CH), jnp.float32, -bound, bound)
    bias = jax.random.uniform(k_b, (1, OUT_CH), jnp.float32, -bound, bound)
    w_t = jnp.transpose(w)  # (IN_CH, OUT_CH) so kernel computes a @ W^T + b

    n_neg = min(100, B // 2)
    neg_idxs = _sample_negative_indices(k_samp, B, n_neg)

    loss = av_sync_forward(video, audio, w_t, bias, neg_idxs)
    jax.block_until_ready(loss)

    # Correctness sanity check against the pure-JAX reference
    # (tolerance absorbs EUP rsqrt vs sqrt/divide rounding differences).
    ref = _reference_forward(video, audio, w_t, bias, neg_idxs)
    assert jnp.allclose(loss, ref, rtol=1e-3, atol=1e-3), (loss, ref)

    print("KERNEL_OK")
</pallas_src>

<mosaic_0001>
module attributes {stable_mosaic.version = 11 : i64} {
  func.func @_av_sync_kernel(%arg0: memref<8x32xf32, #tpu.memory_space<vmem>>, %arg1: memref<8x32xf32, #tpu.memory_space<vmem>>, %arg2: memref<32x32xf32, #tpu.memory_space<vmem>>, %arg3: memref<1x32xf32, #tpu.memory_space<vmem>>, %arg4: memref<8x8xf32, #tpu.memory_space<vmem>>, %arg5: memref<1x1xf32, #tpu.memory_space<smem>>) attributes {dimension_semantics = [], scalar_prefetch = 0 : i64, scratch_operands = 0 : i64, tpu.core_type = #tpu.core_type<tc>} {
    %c0 = arith.constant 0 : index
    %c0_0 = arith.constant 0 : index
    %0 = vector.load %arg0[%c0, %c0_0] : memref<8x32xf32, #tpu.memory_space<vmem>>, vector<8x32xf32>
    %1 = arith.mulf %0, %0 : vector<8x32xf32>
    %cst = arith.constant dense<0.000000e+00> : vector<8xf32>
    %2 = vector.multi_reduction <add>, %1, %cst [1] : vector<8x32xf32> to vector<8xf32>
    %3 = vector.shape_cast %2 : vector<8xf32> to vector<8x1xf32>
    %cst_1 = arith.constant 1.000000e-24 : f32
    %4 = vector.broadcast %cst_1 : f32 to vector<8x1xf32>
    %5 = arith.maximumf %3, %4 : vector<8x1xf32>
    %6 = math.rsqrt %5 : vector<8x1xf32>
    %7 = vector.broadcast %6 : vector<8x1xf32> to vector<8x32xf32>
    %8 = arith.mulf %0, %7 : vector<8x32xf32>
    %c0_2 = arith.constant 0 : index
    %c0_3 = arith.constant 0 : index
    %9 = vector.load %arg1[%c0_2, %c0_3] : memref<8x32xf32, #tpu.memory_space<vmem>>, vector<8x32xf32>
    %10 = arith.mulf %9, %9 : vector<8x32xf32>
    %cst_4 = arith.constant dense<0.000000e+00> : vector<8xf32>
    %11 = vector.multi_reduction <add>, %10, %cst_4 [1] : vector<8x32xf32> to vector<8xf32>
    %12 = vector.shape_cast %11 : vector<8xf32> to vector<8x1xf32>
    %cst_5 = arith.constant 1.000000e-24 : f32
    %13 = vector.broadcast %cst_5 : f32 to vector<8x1xf32>
    %14 = arith.maximumf %12, %13 : vector<8x1xf32>
    %15 = math.rsqrt %14 : vector<8x1xf32>
    %16 = vector.broadcast %15 : vector<8x1xf32> to vector<8x32xf32>
    %17 = arith.mulf %9, %16 : vector<8x32xf32>
    %c0_6 = arith.constant 0 : index
    %c0_7 = arith.constant 0 : index
    %18 = vector.load %arg2[%c0_6, %c0_7] : memref<32x32xf32, #tpu.memory_space<vmem>>, vector<32x32xf32>
    %cst_8 = arith.constant dense<0.000000e+00> : vector<8x32xf32>
    %19 = tpu.matmul %17, %18, %cst_8 {dimension_numbers = #tpu.dot_dimension_numbers<[1], [0], [0], [1], [0, 0, 1, 1], [], []>} : vector<8x32xf32>, vector<32x32xf32>, vector<8x32xf32> -> vector<8x32xf32>
    %c0_9 = arith.constant 0 : index
    %c0_10 = arith.constant 0 : index
    %20 = vector.load %arg3[%c0_9, %c0_10] : memref<1x32xf32, #tpu.memory_space<vmem>>, vector<1x32xf32>
    %21 = vector.broadcast %20 : vector<1x32xf32> to vector<8x32xf32>
    %22 = arith.addf %19, %21 : vector<8x32xf32>
    %23 = arith.mulf %22, %22 : vector<8x32xf32>
    %cst_11 = arith.constant dense<0.000000e+00> : vector<8xf32>
    %24 = vector.multi_reduction <add>, %23, %cst_11 [1] : vector<8x32xf32> to vector<8xf32>
    %25 = vector.shape_cast %24 : vector<8xf32> to vector<8x1xf32>
    %cst_12 = arith.constant 1.000000e-24 : f32
    %26 = vector.broadcast %cst_12 : f32 to vector<8x1xf32>
    %27 = arith.maximumf %25, %26 : vector<8x1xf32>
    %28 = math.rsqrt %27 : vector<8x1xf32>
    %29 = vector.broadcast %28 : vector<8x1xf32> to vector<8x32xf32>
    %30 = arith.mulf %22, %29 : vector<8x32xf32>
    %31 = vector.shape_cast %8 : vector<8x32xf32> to vector<8x1x32xf32>
    %32 = vector.shape_cast %30 : vector<8x32xf32> to vector<1x8x32xf32>
    %33 = vector.broadcast %31 : vector<8x1x32xf32> to vector<8x8x32xf32>
    %34 = vector.broadcast %32 : vector<1x8x32xf32> to vector<8x8x32xf32>
    %35 = arith.subf %33, %34 : vector<8x8x32xf32>
    %36 = math.absf %35 : vector<8x8x32xf32>
    %cst_13 = arith.constant dense<0.000000e+00> : vector<8x8xf32>
    %37 = vector.multi_reduction <add>, %36, %cst_13 [2] : vector<8x8x32xf32> to vector<8x8xf32>
    %c0_14 = arith.constant 0 : index
    %c0_15 = arith.constant 0 : index
    %38 = vector.load %arg4[%c0_14, %c0_15] : memref<8x8xf32, #tpu.memory_space<vmem>>, vector<8x8xf32>
    %39 = arith.mulf %37, %38 : vector<8x8xf32>
    %40 = vector.shape_cast %39 : vector<8x8xf32> to vector<1x8x8xf32>
    %cst_16 = arith.constant dense<0.000000e+00> : vector<1xf32>
    %41 = vector.multi_reduction <add>, %40, %cst_16 [1, 2] : vector<1x8x8xf32> to vector<1xf32>
    %42 = vector.shape_cast %41 : vector<1xf32> to vector<1x1x1xf32>
    %43 = vector.extract %42[0, 0, 0] : f32 from vector<1x1x1xf32>
    %c0_17 = arith.constant 0 : index
    %c0_18 = arith.constant 0 : index
    %44 = memref.load %arg5[%c0_17, %c0_18] : memref<1x1xf32, #tpu.memory_space<smem>>
    memref.store %43, %arg5[%c0_17, %c0_18] : memref<1x1xf32, #tpu.memory_space<smem>>
    return
  }
}

</mosaic_0001>

<llo_original>
// kernel: av_sync_forward.1
$region0: #{av_sync_forward.1}
  #allocation0 [shape = 'u32[]', space=smem, size = 0x4, offset = 0x4, fixed_abs, tag = 'smem constant byte address 0x4 - core index']
  #allocation1 [shape = 'u32[144,128]{1,0:T(1,128)}', space=vmem, size = 0x12000, scoped, tag = 'internal scratch']
  %s0 = inlined_call_operand.vmem [shape: f32[8,32], index: 0, kind: input, shape index: {}]
  %s1 = inlined_call_operand.vmem [shape: f32[8,32], index: 1, kind: input, shape index: {}]
  %s2 = inlined_call_operand.hbm [shape: f32[32,32], index: 2, kind: input, shape index: {}]
  %s3 = inlined_call_operand.vmem [shape: f32[1,32], index: 3, kind: input, shape index: {}]
  %s4 = inlined_call_operand.vmem [shape: f32[8,8], index: 4, kind: input, shape index: {}]
  %s5 = inlined_call_operand.hbm [shape: f32[1,1], index: 5, kind: output, shape index: {}]
  %s6 = sld [smem:[#allocation0]]
  $region34: #{av_sync_forward.1} parent=0
    _
  %s8 = ssub.s32 1, %s6
  %s9 = scalar_select 0, %s8, %s6
  $region1: #{av_sync_forward.1} parent=0
    #allocation2 [shape = 'u8[16384]{0}', space=vmem, size = 0x4000, scoped, tag = 'input window, operand 2, single buffered']
    #allocation3 [shape = 's32[1]{0}', space=sflag, size = 0x4, scoped, tag = 'scoped memory for av_sync_forward.1']
    #allocation4 [shape = 's32[1]{0}', space=sflag, size = 0x4, scoped, tag = 'scoped memory for av_sync_forward.1']
    #allocation5 [shape = 'u8[512]{0}', space=smem, size = 0x200, scoped, tag = 'output window, operand 0, single buffered']
    %10 = vsyncpa [#allocation3], 0
    %11 = vsyncpa [#allocation4], 0
    // Predicated region
    $region2: #{av_sync_forward.1} parent=1 // pred_check
      _
    $region3: #{av_sync_forward.1} parent=1 // pred_check_branch
      %13 = sbr.rel (0) target = $region5
    $region4: #{av_sync_forward.1} parent=1 // pred_region
      _
    $region5: #{av_sync_forward.1} parent=1 // pred_fallthru
      _
    // Predicated region
    $region6: #{av_sync_forward.1} parent=1 // pred_check
      _
    $region7: #{av_sync_forward.1} parent=1 // pred_check_branch
      %15 = sbr.rel (0) target = $region9
    $region8: #{av_sync_forward.1} parent=1 // pred_region
      _
    $region9: #{av_sync_forward.1} parent=1 // pred_fallthru
      _
    // Predicated region
    $region10: #{av_sync_forward.1} parent=1 // pred_check
      _
    $region11: #{av_sync_forward.1} parent=1 // pred_check_branch
      %17 = sbr.rel (0) target = $region13
    $region12: #{av_sync_forward.1} parent=1 // pred_region
      %s19 = ssub.s32 512, 512
      %20 = vsyncadd [#allocation3], %s19
      %s21 = sshll.u32 [#allocation2], 4
      %s22 = int_to_ptr.vmem [resolvable:$true] %s21
      %27 = dma.hbm_to_vmem [thread:$0]  %s2, 512, %s22, [#allocation3], 128, 128, 8
    $region13: #{av_sync_forward.1} parent=1 // pred_fallthru
      _
    // Predicated region
    $region14: #{av_sync_forward.1} parent=1 // pred_check
      _
    $region15: #{av_sync_forward.1} parent=1 // pred_check_branch
      %29 = sbr.rel (0) target = $region17
    $region16: #{av_sync_forward.1} parent=1 // pred_region
      _
    $region17: #{av_sync_forward.1} parent=1 // pred_fallthru
      _
    // Predicated region
    $region18: #{av_sync_forward.1} parent=1 // pred_check
      _
    $region19: #{av_sync_forward.1} parent=1 // pred_check_branch
      %31 = sbr.rel (0) target = $region21
    $region20: #{av_sync_forward.1} parent=1 // pred_region
      _
    $region21: #{av_sync_forward.1} parent=1 // pred_fallthru
      _
    // Predicated region
    $region22: #{av_sync_forward.1} parent=1 // pred_check
      _
    $region23: #{av_sync_forward.1} parent=1 // pred_check_branch
      %33 = sbr.rel (0) target = $region25
    $region24: #{av_sync_forward.1} parent=1 // pred_region
      %34 = dma.done [#allocation3], 512
    $region25: #{av_sync_forward.1} parent=1 // pred_fallthru
      _
    %v35 = vld [vmem:[%s0] sm:$0xff]
    %v36 = vmul.f32 %v35, %v35
    %vm37 = vcmask 261120
    %v38 = vsel %vm37, %v36, 0.0
    %39 = vadd.xlane.f32.xlu0 %v38
    %v40 = vpop.xlane.xlu0 %39
    %v41 = vmax.f32 %v40, 1e-24
    %v42 = vrsqrt.pop %v41
    %v43 = vmul.f32 %v35, %v42
    %v44 = vld [vmem:[%s1] sm:$0xff]
    %v45 = vmul.f32 %v44, %v44
    %v46 = vsel %vm37, %v45, 0.0
    %47 = vadd.xlane.f32.xlu0 %v46
    %v48 = vpop.xlane.xlu0 %47
    %v49 = vmax.f32 %v48, 1e-24
    %v50 = vrsqrt.pop %v49
    %v51 = vmul.f32 %v44, %v50
    %v52 = vld [vmem:[#allocation2] sm:$0xff]
    %v53 = vld [vmem:[#allocation2 + $0x8] sm:$0xff]
    %v54 = vld [vmem:[#allocation2 + $0x10] sm:$0xff]
    %v55 = vld [vmem:[#allocation2 + $0x18] sm:$0xff]
    %v56 = vld [vmem:[%s3] sm:$0x1]
    %v58 = vlaneseq
    %v59 = vshrl.u32 %v58, 7
    %v60 = vsub.s32 0, %v59
    %v61 = vrot.slane %v56, %v60
    %v64 = vsel %vm37, %v51, 0
    %66 = vmatprep.subr.mxu0 0.0
    %67 = vmatpush1.msra.mxu0 0.0
    %68 = vmatprep.subr.mxu0 0.0
    %69 = vmatpush1.msra.mxu0 0.0
    %70 = vmatprep.subr.mxu0 0.0
    %71 = vmatpush1.msra.mxu0 0.0
    %72 = vmatprep.subr.mxu0 0.0
    %73 = vmatpush1.msra.mxu0 0.0
    %74 = vmatprep.subr.mxu0 0.0
    %75 = vmatpush1.msra.mxu0 0.0
    %76 = vmatprep.subr.mxu0 0.0
    %77 = vmatpush1.msra.mxu0 0.0
    %78 = vmatprep.subr.mxu0 0.0
    %79 = vmatpush1.msra.mxu0 0.0
    %80 = vmatprep.subr.mxu0 0.0
    %81 = vmatpush1.msra.mxu0 0.0
    %82 = vmatprep.subr.mxu0 0.0
    %83 = vmatpush1.msra.mxu0 0.0
    %84 = vmatprep.subr.mxu0 0.0
    %85 = vmatpush1.msra.mxu0 0.0
    %86 = vmatprep.subr.mxu0 0.0
    %87 = vmatpush1.msra.mxu0 0.0
    %88 = vmatprep.subr.mxu0 0.0
    %89 = vmatpush1.msra.mxu0 0.0
    %90 = vmatprep.subr.mxu0 0.0
    %91 = vmatpush1.msra.mxu0 %v55
    %92 = vmatprep.subr.mxu0 0.0
    %93 = vmatpush1.msra.mxu0 %v54
    %94 = vmatprep.subr.mxu0 0.0
    %95 = vmatpush1.msra.mxu0 %v53
    %96 = vmatprep.subr.mxu0 0.0
    %97 = vmatpush1.msra.mxu0 %v52
    %98 = vmatprep.subr.mxu0 0.0
    %99 = vmatpush2.msra.mxu0 0.0
    %100 = vmatprep.subr.mxu0 0.0
    %101 = vmatpush2.msra.mxu0 0.0
    %102 = vmatprep.subr.mxu0 0.0
    %103 = vmatpush2.msra.mxu0 0.0
    %104 = vmatprep.subr.mxu0 0.0
    %105 = vmatpush2.msra.mxu0 0.0
    %106 = vmatprep.subr.mxu0 0.0
    %107 = vmatpush2.msra.mxu0 0.0
    %108 = vmatprep.subr.mxu0 0.0
    %109 = vmatpush2.msra.mxu0 0.0
    %110 = vmatprep.subr.mxu0 0.0
    %111 = vmatpush2.msra.mxu0 0.0
    %112 = vmatprep.subr.mxu0 0.0
    %113 = vmatpush2.msra.mxu0 0.0
    %114 = vmatprep.subr.mxu0 0.0
    %115 = vmatpush2.msra.mxu0 0.0
    %116 = vmatprep.subr.mxu0 0.0
    %117 = vmatpush2.msra.mxu0 0.0
    %118 = vmatprep.subr.mxu0 0.0
    %119 = vmatpush2.msra.mxu0 0.0
    %120 = vmatprep.subr.mxu0 0.0
    %121 = vmatpush2.msra.mxu0 0.0
    %122 = vmatprep.subr.mxu0 0.0
    %123 = vmatpush2.msra.mxu0 0.0
    %124 = vmatprep.subr.mxu0 0.0
    %125 = vmatpush2.msra.mxu0 0.0
    %126 = vmatprep.subr.mxu0 0.0
    %127 = vmatpush2.msra.mxu0 0.0
    %128 = vmatprep.subr.mxu0 0.0
    %129 = vmatpush2.msra.mxu0 0.0
    %130 = vmatprep.mubr.f32.mxu0 0.0
    %131 = vmatmul.mubr.f32.gmra.mxu0 %v64
    %v132 = vpop.f32.mrf.mxu0
    %v133 = vadd.f32 %v61, %v132
    %v134 = vpop.f32.mrf.mxu0
    %135 = vdwg.mxu0
    %v136 = vmul.f32 %v133, %v133
    %v137 = vsel %vm37, %v136, 0.0
    %138 = vadd.xlane.f32.xlu0 %v137
    %v139 = vpop.xlane.xlu0 %138
    %v140 = vmax.f32 %v139, 1e-24
    %v141 = vrsqrt.pop %v140
    %v142 = vmul.f32 %v133, %v141
    %v144 = vcombine.high %v43, %v43
    %v146 = vunpack.c.l.s4 1966171168
    %v147 = vunpack.c.0.s8 %v146
    %v148 = vlaneseq
    %v149 = vshrl.u32 %v148, 7
    %v150 = vsub.s32 %v147, %v149
    %v151 = vrot.slane %v43, %v150
    %v153 = vunpack.c.l.s4 1966171168
    %v154 = vunpack.c.0.s8 %v153
    %v155 = vlaneseq
    %v156 = vshrl.u32 %v155, 7
    %v157 = vsub.s32 %v154, %v156
    %v158 = vrot.slane %v144, %v157
    %v159 = vcombine.high %v151, %v151
    %v160 = vcombine.high %v158, %v158
    %v162 = vunpack.c.l.s4 1966171168
    %v163 = vunpack.c.0.s8 %v162
    %v164 = vlaneseq
    %v165 = vshrl.u32 %v164, 7
    %v166 = vsub.s32 %v163, %v165
    %v167 = vrot.slane %v151, %v166
    %v169 = vunpack.c.l.s4 1966171168
    %v170 = vunpack.c.0.s8 %v169
    %v171 = vlaneseq
    %v172 = vshrl.u32 %v171, 7
    %v173 = vsub.s32 %v170, %v172
    %v174 = vrot.slane %v158, %v173
    %v176 = vunpack.c.l.s4 1966171168
    %v177 = vunpack.c.0.s8 %v176
    %v178 = vlaneseq
    %v179 = vshrl.u32 %v178, 7
    %v180 = vsub.s32 %v177, %v179
    %v181 = vrot.slane %v159, %v180
    %v183 = vunpack.c.l.s4 1966171168
    %v184 = vunpack.c.0.s8 %v183
    %v185 = vlaneseq
    %v186 = vshrl.u32 %v185, 7
    %v187 = vsub.s32 %v184, %v186
    %v188 = vrot.slane %v160, %v187
    %v189 = vcombine.high %v167, %v167
    %v190 = vcombine.high %v174, %v174
    %v191 = vcombine.high %v181, %v181
    %v192 = vcombine.high %v188, %v188
    %v193 = vlaneseq
    %v194 = vshrl.u32 %v193, 7
    %v195 = vsub.s32 0, %v194
    %v196 = vrot.slane %v167, %v195
    %v197 = vlaneseq
    %v198 = vshrl.u32 %v197, 7
    %v199 = vsub.s32 0, %v198
    %v200 = vrot.slane %v181, %v199
    %v201 = vlaneseq
    %v202 = vshrl.u32 %v201, 7
    %v203 = vsub.s32 0, %v202
    %v204 = vrot.slane %v189, %v203
    %v205 = vlaneseq
    %v206 = vshrl.u32 %v205, 7
    %v207 = vsub.s32 0, %v206
    %v208 = vrot.slane %v191, %v207
    %v209 = vlaneseq
    %v210 = vshrl.u32 %v209, 7
    %v211 = vsub.s32 0, %v210
    %v212 = vrot.slane %v174, %v211
    %v213 = vlaneseq
    %v214 = vshrl.u32 %v213, 7
    %v215 = vsub.s32 0, %v214
    %v216 = vrot.slane %v188, %v215
    %v217 = vlaneseq
    %v218 = vshrl.u32 %v217, 7
    %v219 = vsub.s32 0, %v218
    %v220 = vrot.slane %v190, %v219
    %v221 = vlaneseq
    %v222 = vshrl.u32 %v221, 7
    %v223 = vsub.s32 0, %v222
    %v224 = vrot.slane %v192, %v223
    %v233 = vsub.f32 %v196, %v142
    %v234 = vsub.f32 %v200, %v142
    %v235 = vsub.f32 %v204, %v142
    %v236 = vsub.f32 %v208, %v142
    %v237 = vsub.f32 %v212, %v142
    %v238 = vsub.f32 %v216, %v142
    %v239 = vsub.f32 %v220, %v142
    %v240 = vsub.f32 %v224, %v142
    %v241 = vand.u32 2147483647, %v233
    %v242 = vand.u32 2147483647, %v234
    %v243 = vand.u32 2147483647, %v235
    %v244 = vand.u32 2147483647, %v236
    %v245 = vand.u32 2147483647, %v237
    %v246 = vand.u32 2147483647, %v238
    %v247 = vand.u32 2147483647, %v239
    %v248 = vand.u32 2147483647, %v240
    %v249 = vsel %vm37, %v241, 0.0
    %250 = vadd.xlane.f32.xlu0 %v249
    %v251 = vpop.xlane.xlu0 %250
    %v252 = vsel %vm37, %v242, 0.0
    %253 = vadd.xlane.f32.xlu0 %v252
    %v254 = vpop.xlane.xlu0 %253
    %v255 = vsel %vm37, %v243, 0.0
    %256 = vadd.xlane.f32.xlu0 %v255
    %v257 = vpop.xlane.xlu0 %256
    %v258 = vsel %vm37, %v244, 0.0
    %259 = vadd.xlane.f32.xlu0 %v258
    %v260 = vpop.xlane.xlu0 %259
    %v261 = vsel %vm37, %v245, 0.0
    %262 = vadd.xlane.f32.xlu0 %v261
    %v263 = vpop.xlane.xlu0 %262
    %v264 = vsel %vm37, %v246, 0.0
    %265 = vadd.xlane.f32.xlu0 %v264
    %v266 = vpop.xlane.xlu0 %265
    %v267 = vsel %vm37, %v247, 0.0
    %268 = vadd.xlane.f32.xlu0 %v267
    %v269 = vpop.xlane.xlu0 %268
    %v270 = vsel %vm37, %v248, 0.0
    %271 = vadd.xlane.f32.xlu0 %v270
    %v272 = vpop.xlane.xlu0 %271
    %v273 = vld [vmem:[%s4] sm:$0xff]
    %v275 = vlaneseq
    %v276 = vshrl.u32 %v275, 7
    %v277 = vsub.s32 0, %v276
    %v278 = vrot.slane %v273, %v277
    %280 = vbcast.lane.b32.xlu0 %v278, 256
    %v281 = vpop.permute.xlu0 %280
    %v282 = vlaneseq
    %v283 = vshrl.u32 %v282, 7
    %v284 = vsub.s32 1, %v283
    %v285 = vrot.slane %v273, %v284
    %287 = vbcast.lane.b32.xlu0 %v285, 256
    %v288 = vpop.permute.xlu0 %287
    %v289 = vlaneseq
    %v290 = vshrl.u32 %v289, 7
    %v291 = vsub.s32 2, %v290
    %v292 = vrot.slane %v273, %v291
    %294 = vbcast.lane.b32.xlu0 %v292, 256
    %v295 = vpop.permute.xlu0 %294
    %v296 = vlaneseq
    %v297 = vshrl.u32 %v296, 7
    %v298 = vsub.s32 3, %v297
    %v299 = vrot.slane %v273, %v298
    %301 = vbcast.lane.b32.xlu0 %v299, 256
    %v302 = vpop.permute.xlu0 %301
    %v303 = vlaneseq
    %v304 = vshrl.u32 %v303, 7
    %v305 = vsub.s32 4, %v304
    %v306 = vrot.slane %v273, %v305
    %308 = vbcast.lane.b32.xlu0 %v306, 256
    %v309 = vpop.permute.xlu0 %308
    %v310 = vlaneseq
    %v311 = vshrl.u32 %v310, 7
    %v312 = vsub.s32 5, %v311
    %v313 = vrot.slane %v273, %v312
    %315 = vbcast.lane.b32.xlu0 %v313, 256
    %v316 = vpop.permute.xlu0 %315
    %v317 = vlaneseq
    %v318 = vshrl.u32 %v317, 7
    %v319 = vsub.s32 6, %v318
    %v320 = vrot.slane %v273, %v319
    %322 = vbcast.lane.b32.xlu0 %v320, 256
    %v323 = vpop.permute.xlu0 %322
    %v324 = vlaneseq
    %v325 = vshrl.u32 %v324, 7
    %v326 = vsub.s32 7, %v325
    %v327 = vrot.slane %v273, %v326
    %329 = vbcast.lane.b32.xlu0 %v327, 256
    %v330 = vpop.permute.xlu0 %329
    %v339 = vmul.f32 %v251, %v281
    %v340 = vmul.f32 %v254, %v288
    %v341 = vmul.f32 %v257, %v295
    %v342 = vmul.f32 %v260, %v302
    %v343 = vmul.f32 %v263, %v309
    %v344 = vmul.f32 %v266, %v316
    %v345 = vmul.f32 %v269, %v323
    %v346 = vmul.f32 %v272, %v330
    %355 = vset.pattern.permute.xlu0 0
    %356 = vperm.xlu0 %355, %v339
    %v357 = vpop.permute.xlu0 %356
    %358 = vset.pattern.permute.xlu0 0
    %359 = vperm.xlu0 %358, %v340
    %v360 = vpop.permute.xlu0 %359
    %361 = vset.pattern.permute.xlu0 0
    %362 = vperm.xlu0 %361, %v341
    %v363 = vpop.permute.xlu0 %362
    %364 = vset.pattern.permute.xlu0 0
    %365 = vperm.xlu0 %364, %v342
    %v366 = vpop.permute.xlu0 %365
    %367 = vset.pattern.permute.xlu0 0
    %368 = vperm.xlu0 %367, %v343
    %v369 = vpop.permute.xlu0 %368
    %370 = vset.pattern.permute.xlu0 0
    %371 = vperm.xlu0 %370, %v344
    %v372 = vpop.permute.xlu0 %371
    %373 = vset.pattern.permute.xlu0 0
    %374 = vperm.xlu0 %373, %v345
    %v375 = vpop.permute.xlu0 %374
    %376 = vset.pattern.permute.xlu0 0
    %377 = vperm.xlu0 %376, %v346
    %v378 = vpop.permute.xlu0 %377
    %v379 = vlaneseq
    %v380 = vand.u32 %v379, 127
    %v381 = vlaneseq
    %v382 = vshrl.u32 %v381, 7
    %v383 = vsub.s32 %v380, %v382
    %v384 = vrot.slane %v357, %v383
    %v385 = vlaneseq
    %v386 = vshrl.u32 %v385, 7
    %v387 = vsub.s32 %v380, %v386
    %v388 = vrot.slane %v360, %v387
    %v389 = vlaneseq
    %v390 = vshrl.u32 %v389, 7
    %v391 = vsub.s32 %v380, %v390
    %v392 = vrot.slane %v363, %v391
    %v393 = vlaneseq
    %v394 = vshrl.u32 %v393, 7
    %v395 = vsub.s32 %v380, %v394
    %v396 = vrot.slane %v366, %v395
    %v397 = vlaneseq
    %v398 = vshrl.u32 %v397, 7
    %v399 = vsub.s32 %v380, %v398
    %v400 = vrot.slane %v369, %v399
    %v401 = vlaneseq
    %v402 = vshrl.u32 %v401, 7
    %v403 = vsub.s32 %v380, %v402
    %v404 = vrot.slane %v372, %v403
    %v405 = vlaneseq
    %v406 = vshrl.u32 %v405, 7
    %v407 = vsub.s32 %v380, %v406
    %v408 = vrot.slane %v375, %v407
    %v409 = vlaneseq
    %v410 = vshrl.u32 %v409, 7
    %v411 = vsub.s32 %v380, %v410
    %v412 = vrot.slane %v378, %v411
    %vm413 = vcmask 1041409
    %v414 = vsel %vm413, %v388, %v384
    %vm415 = vcmask 1042434
    %v416 = vsel %vm415, %v392, %v414
    %vm417 = vcmask 1043459
    %v418 = vsel %vm417, %v396, %v416
    %vm419 = vcmask 1044484
    %v420 = vsel %vm419, %v400, %v418
    %vm421 = vcmask 1045509
    %v422 = vsel %vm421, %v404, %v420
    %vm423 = vcmask 1046534
    %v424 = vsel %vm423, %v408, %v422
    %vm425 = vcmask 1047559
    %v426 = vsel %vm425, %v412, %v424
    %vm428 = vcmask 64512
    %v429 = vsel %vm428, %v426, 0.0
    %430 = vadd.xlane.f32.xlu0 %v429
    %v431 = vpop.xlane.xlu0 %430
    %v432 = vrot.slane %v431, 4
    %v433 = vadd.f32 %v431, %v432
    %v434 = vrot.slane %v433, 2
    %v435 = vadd.f32 %v433, %v434
    %v436 = vrot.slane %v435, 1
    %v437 = vadd.f32 %v435, %v436
    %s438 = vtos %v437
    %s439 = scalar_lea.smem [#allocation5], 0
    %440 = sst [smem:[%s439]] %s438
    // Predicated region
    $region26: #{av_sync_forward.1} parent=1 // pred_check
      _
    $region27: #{av_sync_forward.1} parent=1 // pred_check_branch
      %442 = sbr.rel (0) target = $region29
    $region28: #{av_sync_forward.1} parent=1 // pred_region
      %s444 = ssub.s32 16, 16
      %445 = vsyncadd [#allocation4], %s444
      %448 = dma.smem_to_hbm [#allocation5], 16, %s5, [#allocation4]
    $region29: #{av_sync_forward.1} parent=1 // pred_fallthru
      _
    // Predicated region
    $region30: #{av_sync_forward.1} parent=1 // pred_check
      _
    $region31: #{av_sync_forward.1} parent=1 // pred_check_branch
      %450 = sbr.rel (0) target = $region33
    $region32: #{av_sync_forward.1} parent=1 // pred_region
      %451 = dma.done [#allocation4], 16
    $region33: #{av_sync_forward.1} parent=1 // pred_fallthru
      _
    %452 = sfence
    %453 = vsyncpa [#allocation3], 1
    %454 = vsyncpa [#allocation4], 1

</llo_original>
